<compile_context>
chip_gen: v6e
topology: v6e:2x2x1
jax: 0.10.0
libtpu: 0.0.40
codegen_flags: <defaults>
</compile_context>

<pallas_src>
import functools

import jax
import jax.numpy as jnp
from jax.experimental import pallas as pl
from jax.experimental.pallas import tpu as pltpu


# ------------------------------- kernels ------------------------------------

def _margin_reduce_kernel(pos_ref, neg_ref, pos_out_ref, part_ref, *,
                          margin, rows, block_rows, need_mask):
    """Hinge + per-lane partial sums accumulated in a resident output block."""
    c = pl.program_id(0)            # TensorCore-split axis ("parallel")
    i = pl.program_id(1)            # row-tile axis ("arbitrary", serial)

    pos_s = pos_ref[...].astype(jnp.float32) * 0.5 + 0.5
    neg_s = neg_ref[...].astype(jnp.float32) * 0.5 + 0.5
    score = jnp.maximum(margin - pos_s + neg_s, 0.0)

    pos_out_ref[...] = pos_s.astype(pos_out_ref.dtype)

    if need_mask:
        # Mask (a) the ragged final row tile and (b) the clamped duplicate tile
        # when the tiles don't split evenly across the core axis.
        row0 = (c * pl.num_programs(1) + i) * block_rows
        rid = row0 + jax.lax.broadcasted_iota(jnp.int32, score.shape, 0)
        score = jnp.where(rid < rows, score, 0.0)

    @pl.when(i == 0)
    def _():
        part_ref[...] = jnp.zeros_like(part_ref)

    # (1, cols) lane-dense partial sum; part block stays VMEM-resident across
    # the whole inner axis and is written back to HBM only once per core.
    part_ref[...] += jnp.sum(score, axis=0, keepdims=True)[None]


def _margin_none_kernel(pos_ref, neg_ref, pos_out_ref, score_ref, *, margin):
    pos_s = pos_ref[...].astype(jnp.float32) * 0.5 + 0.5
    neg_s = neg_ref[...].astype(jnp.float32) * 0.5 + 0.5
    score = jnp.maximum(margin - pos_s + neg_s, 0.0)
    pos_out_ref[...] = pos_s.astype(pos_out_ref.dtype)
    score_ref[...] = score.astype(score_ref.dtype)


# ------------------------------- helpers -------------------------------------

def _pick_cols(n):
    """Largest lane-dense width (multiple of 128) dividing n, preferring >=8 rows."""
    cands = [c for c in (2048, 1024, 512, 256, 128) if n % c == 0]
    if not cands:
        return None
    for c in cands:
        if n // c >= 8:
            return c
    return cands[0]


def _pick_block_rows(rows, cols, itemsize, target_bytes):
    """Row tile sized by VMEM byte budget; prefer a divisor of rows if cheap."""
    if rows <= 8:
        return rows
    budget = max(8, min(rows, (target_bytes // max(1, cols * itemsize)) // 8 * 8))
    if rows % budget == 0:
        return budget
    if rows % 8 == 0:
        # Prefer a divisor of rows (no ragged tail) unless it shrinks the tile >4x.
        t = budget
        while t >= max(8, budget // 4):
            if rows % t == 0:
                return t
            t -= 8
    return budget


def _hinge_jax(pos, neg, margin):
    pos_s = pos.astype(jnp.float32) * 0.5 + 0.5
    neg_s = neg.astype(jnp.float32) * 0.5 + 0.5
    return jnp.maximum(margin - pos_s + neg_s, 0.0), pos_s


# ------------------------------- wrapper -------------------------------------

def margin_loss_known_score(qa_pos_score, qa_neg_score=None, *, margin=0.5,
                            reduction="mean", block_bytes=2 << 20):
    # ---- no-negative branch: single fused elementwise op, already at roofline.
    if qa_neg_score is None:
        return qa_pos_score * 0.5 + 0.5

    orig_shape = qa_pos_score.shape
    dtype = qa_pos_score.dtype
    n = int(qa_pos_score.size)
    margin = float(margin)

    if reduction not in ("sum", "mean", "none"):
        # PyTorch module leaves loss == 0 for unknown reductions.
        return jnp.zeros((), dtype), qa_pos_score * 0.5 + 0.5

    flat_pos = qa_pos_score.reshape(-1)
    flat_neg = qa_neg_score.reshape(-1)

    cols = _pick_cols(n)
    if cols is None:
        n_main = (n // 128) * 128          # lane-ragged: tiny tail handled in JAX
        if n_main == 0:                    # < 128 elements: not worth a kernel
            score, pos_s = _hinge_jax(qa_pos_score, qa_neg_score, margin)
            pos_s = pos_s.astype(dtype)
            if reduction == "none":
                return score.astype(dtype), pos_s
            loss = score.sum() if reduction == "sum" else score.mean()
            return loss.astype(dtype), pos_s
        cols = _pick_cols(n_main)
    else:
        n_main = n
    n_tail = n - n_main

    rows = n_main // cols
    itemsize = jnp.dtype(dtype).itemsize
    tm = _pick_block_rows(rows, cols, itemsize, block_bytes)
    T = pl.cdiv(rows, tm)                  # number of row tiles

    main_pos = flat_pos if n_tail == 0 else flat_pos[:n_main]
    main_neg = flat_neg if n_tail == 0 else flat_neg[:n_main]
    pos2 = main_pos.reshape(rows, cols)    # metadata-only reshape (contiguous)
    neg2 = main_neg.reshape(rows, cols)

    # ----------------------------- 'none' path ------------------------------
    if reduction == "none":
        row_spec = pl.BlockSpec((tm, cols), lambda i: (i, 0))
        pos_main, score_main = pl.pallas_call(
            functools.partial(_margin_none_kernel, margin=margin),
            out_shape=(jax.ShapeDtypeStruct((rows, cols), dtype),
                       jax.ShapeDtypeStruct((rows, cols), dtype)),
            grid=(T,),
            in_specs=[row_spec, row_spec],
            out_specs=(row_spec, row_spec),
            compiler_params=pltpu.CompilerParams(
                dimension_semantics=("parallel",)),
        )(pos2, neg2)
        if n_tail:
            t_score, t_pos = _hinge_jax(flat_pos[n_main:], flat_neg[n_main:], margin)
            score = jnp.concatenate([score_main.reshape(-1), t_score.astype(dtype)])
            pos_s = jnp.concatenate([pos_main.reshape(-1), t_pos.astype(dtype)])
            return score.reshape(orig_shape), pos_s.reshape(orig_shape)
        return score_main.reshape(orig_shape), pos_main.reshape(orig_shape)

    # --------------------------- 'sum' / 'mean' ------------------------------
    NC = 2 if T >= 2 else 1                # 2-way TensorCore split (v7x megacore)
    half = pl.cdiv(T, NC)
    clamp = NC * half > T                  # odd tile count: clamp last block idx
    need_mask = NC * half * tm != rows     # ragged tail and/or clamped duplicate

    if clamp:
        def row_map(c, i):
            return (jnp.minimum(c * half + i, T - 1), 0)
    else:
        def row_map(c, i):
            return (c * half + i, 0)

    pos_main, partials = pl.pallas_call(
        functools.partial(_margin_reduce_kernel, margin=margin, rows=rows,
                          block_rows=tm, need_mask=need_mask),
        out_shape=(jax.ShapeDtypeStruct((rows, cols), dtype),
                   jax.ShapeDtypeStruct((NC, 1, cols), jnp.float32)),
        grid=(NC, half),
        in_specs=[pl.BlockSpec((tm, cols), row_map),
                  pl.BlockSpec((tm, cols), row_map)],
        out_specs=(pl.BlockSpec((tm, cols), row_map),
                   pl.BlockSpec((1, 1, cols), lambda c, i: (c, 0, 0))),
        compiler_params=pltpu.CompilerParams(
            dimension_semantics=("parallel", "arbitrary")),
    )(pos2, neg2)

    total = jnp.sum(partials)              # tiny final cross-lane/core collapse
    if n_tail:
        t_score, t_pos = _hinge_jax(flat_pos[n_main:], flat_neg[n_main:], margin)
        total = total + t_score.sum()
        pos_s = jnp.concatenate([pos_main.reshape(-1),
                                 t_pos.astype(dtype)]).reshape(orig_shape)
    else:
        pos_s = pos_main.reshape(orig_shape)

    scale = 1.0 if reduction == "sum" else 1.0 / float(n)
    loss = (total * scale).astype(dtype)
    return loss, pos_s


# --------------------------------- demo --------------------------------------

if __name__ == "__main__":
    key = jax.random.PRNGKey(0)
    k = jax.random.split(key, 8)
    margin = 0.3

    def ref_all(pos, neg, m):
        ps = pos * 0.5 + 0.5
        ns = neg * 0.5 + 0.5
        return jnp.maximum(m - ps + ns, 0.0), ps

    # --- (N, H) case: lane-dense single-tile path ---------------------------
    N, H = 8, 256
    pos = jax.random.uniform(k[0], (N, H), jnp.float32, -1.0, 1.0)
    neg = jax.random.uniform(k[1], (N, H), jnp.float32, -1.0, 1.0)
    sc_ref, ps_ref = ref_all(pos, neg, margin)

    loss_m, ps = margin_loss_known_score(pos, neg, margin=margin, reduction="mean")
    assert jnp.allclose(loss_m, sc_ref.mean(), atol=1e-5, rtol=1e-5)
    assert jnp.allclose(ps, ps_ref, atol=1e-6, rtol=1e-6)

    loss_s, _ = margin_loss_known_score(pos, neg, margin=margin, reduction="sum")
    assert jnp.allclose(loss_s, sc_ref.sum(), atol=1e-3, rtol=1e-5)

    sc_n, ps_n = margin_loss_known_score(pos, neg, margin=margin, reduction="none")
    assert jnp.allclose(sc_n, sc_ref, atol=1e-6, rtol=1e-6)
    assert jnp.allclose(ps_n, ps_ref, atol=1e-6, rtol=1e-6)

    pos_only = margin_loss_known_score(pos, None, margin=margin)
    assert jnp.allclose(pos_only, ps_ref, atol=1e-6, rtol=1e-6)

    # --- ragged case: multi-tile, 2-core split, row mask + JAX tail ---------
    pos_b = jax.random.uniform(k[2], (50, 96), jnp.float32, -1.0, 1.0)
    neg_b = jax.random.uniform(k[3], (50, 96), jnp.float32, -1.0, 1.0)
    sc_b, ps_b = ref_all(pos_b, neg_b, margin)
    loss_b, psb = margin_loss_known_score(pos_b, neg_b, margin=margin, reduction="mean")
    assert jnp.allclose(loss_b, sc_b.mean(), atol=1e-5, rtol=1e-5)
    assert jnp.allclose(psb, ps_b, atol=1e-6, rtol=1e-6)
    sc_bn, _ = margin_loss_known_score(pos_b, neg_b, margin=margin, reduction="none")
    assert jnp.allclose(sc_bn, sc_b, atol=1e-6, rtol=1e-6)

    # --- 1-D score vector ----------------------------------------------------
    pos_c = jax.random.uniform(k[4], (640,), jnp.float32, -1.0, 1.0)
    neg_c = jax.random.uniform(k[5], (640,), jnp.float32, -1.0, 1.0)
    sc_c, ps_c = ref_all(pos_c, neg_c, margin)
    loss_c, psc = margin_loss_known_score(pos_c, neg_c, margin=margin, reduction="sum")
    assert jnp.allclose(loss_c, sc_c.sum(), atol=1e-3, rtol=1e-5)
    assert jnp.allclose(psc, ps_c, atol=1e-6, rtol=1e-6)

    # --- odd tile count: exercises clamped block index on the core split ----
    pos_d = jax.random.uniform(k[6], (48, 1024), jnp.float32, -1.0, 1.0)
    neg_d = jax.random.uniform(k[7], (48, 1024), jnp.float32, -1.0, 1.0)
    sc_d, ps_d = ref_all(pos_d, neg_d, margin)
    loss_d, psd = margin_loss_known_score(pos_d, neg_d, margin=margin,
                                          reduction="mean", block_bytes=64 * 1024)
    assert jnp.allclose(loss_d, sc_d.mean(), atol=1e-5, rtol=1e-5)
    assert jnp.allclose(psd, ps_d, atol=1e-6, rtol=1e-6)

    jax.block_until_ready((loss_m, loss_s, sc_n, pos_only, loss_b, sc_bn,
                           loss_c, loss_d))
    print("KERNEL_OK")
</pallas_src>

<mosaic_0001>
module attributes {stable_mosaic.version = 11 : i64} {
  func.func @_margin_reduce_kernel(%arg0: i32, %arg1: i32, %arg2: memref<8x256xf32, #tpu.memory_space<vmem>>, %arg3: memref<8x256xf32, #tpu.memory_space<vmem>>, %arg4: memref<8x256xf32, #tpu.memory_space<vmem>>, %arg5: memref<1x1x256xf32, #tpu.memory_space<vmem>>) attributes {dimension_semantics = [#tpu.dimension_semantics<parallel>, #tpu.dimension_semantics<arbitrary>], iteration_bounds = array<i64: 1, 1>, scalar_prefetch = 0 : i64, scratch_operands = 0 : i64, tpu.core_type = #tpu.core_type<tc>, window_params = [{transform_indices = @transform_0, window_bounds = array<i64: 8, 256>}, {transform_indices = @transform_1, window_bounds = array<i64: 8, 256>}, {transform_indices = @transform_2, window_bounds = array<i64: 8, 256>}, {transform_indices = @transform_3, window_bounds = array<i64: 1, 1, 256>}]} {
    %c0 = arith.constant 0 : index
    %c0_0 = arith.constant 0 : index
    %0 = vector.load %arg2[%c0, %c0_0] : memref<8x256xf32, #tpu.memory_space<vmem>>, vector<8x256xf32>
    %cst = arith.constant 5.000000e-01 : f32
    %1 = vector.broadcast %cst : f32 to vector<8x256xf32>
    %2 = arith.mulf %0, %1 : vector<8x256xf32>
    %cst_1 = arith.constant 5.000000e-01 : f32
    %3 = vector.broadcast %cst_1 : f32 to vector<8x256xf32>
    %4 = arith.addf %2, %3 : vector<8x256xf32>
    %c0_2 = arith.constant 0 : index
    %c0_3 = arith.constant 0 : index
    %5 = vector.load %arg3[%c0_2, %c0_3] : memref<8x256xf32, #tpu.memory_space<vmem>>, vector<8x256xf32>
    %cst_4 = arith.constant 5.000000e-01 : f32
    %6 = vector.broadcast %cst_4 : f32 to vector<8x256xf32>
    %7 = arith.mulf %5, %6 : vector<8x256xf32>
    %cst_5 = arith.constant 5.000000e-01 : f32
    %8 = vector.broadcast %cst_5 : f32 to vector<8x256xf32>
    %9 = arith.addf %7, %8 : vector<8x256xf32>
    %cst_6 = arith.constant 3.000000e-01 : f32
    %10 = vector.broadcast %cst_6 : f32 to vector<8x256xf32>
    %11 = arith.subf %10, %4 : vector<8x256xf32>
    %12 = arith.addf %11, %9 : vector<8x256xf32>
    %cst_7 = arith.constant 0.000000e+00 : f32
    %13 = vector.broadcast %cst_7 : f32 to vector<8x256xf32>
    %14 = arith.maximumf %12, %13 : vector<8x256xf32>
    %c0_8 = arith.constant 0 : index
    %c0_9 = arith.constant 0 : index
    %15 = vector.load %arg4[%c0_8, %c0_9] : memref<8x256xf32, #tpu.memory_space<vmem>>, vector<8x256xf32>
    tpu.vector_store %arg4[%c0_8, %c0_9], %4 {strides = array<i32>} : memref<8x256xf32, #tpu.memory_space<vmem>>, vector<8x256xf32>,
    %c0_i32 = arith.constant 0 : i32
    %16 = arith.cmpi eq, %arg1, %c0_i32 : i32
    %17 = arith.extui %16 : i1 to i32
    %c0_i32_10 = arith.constant 0 : i32
    %18 = arith.cmpi ne, %17, %c0_i32_10 : i32
    scf.if %18 {
      %cst_18 = arith.constant 0.000000e+00 : f32
      %25 = vector.broadcast %cst_18 : f32 to vector<1x1x256xf32>
      %c0_19 = arith.constant 0 : index
      %c0_20 = arith.constant 0 : index
      %c0_21 = arith.constant 0 : index
      %26 = vector.load %arg5[%c0_19, %c0_20, %c0_21] : memref<1x1x256xf32, #tpu.memory_space<vmem>>, vector<1x1x256xf32>
      tpu.vector_store %arg5[%c0_19, %c0_20, %c0_21], %25 {strides = array<i32>} : memref<1x1x256xf32, #tpu.memory_space<vmem>>, vector<1x1x256xf32>,
    } else {
    }
    %c0_11 = arith.constant 0 : index
    %c0_12 = arith.constant 0 : index
    %c0_13 = arith.constant 0 : index
    %19 = vector.load %arg5[%c0_11, %c0_12, %c0_13] : memref<1x1x256xf32, #tpu.memory_space<vmem>>, vector<1x1x256xf32>
    %cst_14 = arith.constant dense<0.000000e+00> : vector<256xf32>
    %20 = vector.multi_reduction <add>, %14, %cst_14 [0] : vector<8x256xf32> to vector<256xf32>
    %21 = vector.shape_cast %20 : vector<256xf32> to vector<1x256xf32>
    %22 = vector.shape_cast %21 : vector<1x256xf32> to vector<1x1x256xf32>
    %23 = arith.addf %19, %22 : vector<1x1x256xf32>
    %c0_15 = arith.constant 0 : index
    %c0_16 = arith.constant 0 : index
    %c0_17 = arith.constant 0 : index
    %24 = vector.load %arg5[%c0_15, %c0_16, %c0_17] : memref<1x1x256xf32, #tpu.memory_space<vmem>>, vector<1x1x256xf32>
    tpu.vector_store %arg5[%c0_15, %c0_16, %c0_17], %23 {strides = array<i32>} : memref<1x1x256xf32, #tpu.memory_space<vmem>>, vector<1x1x256xf32>,
    return
  }
  func.func @transform_0(%arg0: i32, %arg1: i32) -> (i32, i32) {
    %c1_i32 = arith.constant 1 : i32
    %0 = arith.muli %arg0, %c1_i32 : i32
    %1 = arith.addi %0, %arg1 : i32
    %c0_i32 = arith.constant 0 : i32
    %c0_i32_0 = arith.constant 0 : i32
    return %1, %c0_i32 : i32, i32
  }
  func.func @transform_1(%arg0: i32, %arg1: i32) -> (i32, i32) {
    %c1_i32 = arith.constant 1 : i32
    %0 = arith.muli %arg0, %c1_i32 : i32
    %1 = arith.addi %0, %arg1 : i32
    %c0_i32 = arith.constant 0 : i32
    %c0_i32_0 = arith.constant 0 : i32
    return %1, %c0_i32 : i32, i32
  }
  func.func @transform_2(%arg0: i32, %arg1: i32) -> (i32, i32) {
    %c1_i32 = arith.constant 1 : i32
    %0 = arith.muli %arg0, %c1_i32 : i32
    %1 = arith.addi %0, %arg1 : i32
    %c0_i32 = arith.constant 0 : i32
    %c0_i32_0 = arith.constant 0 : i32
    return %1, %c0_i32 : i32, i32
  }
  func.func @transform_3(%arg0: i32, %arg1: i32) -> (i32, i32, i32) {
    %c0_i32 = arith.constant 0 : i32
    %c0_i32_0 = arith.constant 0 : i32
    %c0_i32_1 = arith.constant 0 : i32
    return %arg0, %c0_i32, %c0_i32_0 : i32, i32, i32
  }
}

</mosaic_0001>

<llo_original>
// kernel: tpu_custom_call.1
$region0: #{tpu_custom_call.1}
  #allocation0 [shape = 'u32[]', space=smem, size = 0x4, offset = 0x4, fixed_abs, tag = 'smem constant byte address 0x4 - core index']
  #allocation1 [shape = 'u32[144,128]{1,0:T(1,128)}', space=vmem, size = 0x12000, scoped, tag = 'internal scratch']
  %s0 = inlined_call_operand.hbm [shape: f32[8,256], index: 0, kind: input, shape index: {}]
  %s1 = inlined_call_operand.hbm [shape: f32[8,256], index: 1, kind: input, shape index: {}]
  %s2 = inlined_call_operand.hbm [shape: f32[8,256], index: 2, kind: output, shape index: {0}]
  %s3 = inlined_call_operand.hbm [shape: f32[1,1,256], index: 3, kind: output, shape index: {1}]
  %4 = xla_tuple %s2, %s3
  %s5 = sld [smem:[#allocation0]]
  $region38: #{tpu_custom_call.1} parent=0
    _
  %s7 = ssub.s32 1, %s5
  %s8 = scalar_select 0, %s7, %s5
  $region1: #{tpu_custom_call.1} parent=0
    #allocation2 [shape = 'u8[8192]{0}', space=vmem, size = 0x2000, scoped, tag = 'input window, operand 0, single buffered']
    #allocation3 [shape = 's32[1]{0}', space=sflag, size = 0x4, scoped, tag = 'scoped memory for tpu_custom_call.1']
    #allocation4 [shape = 's32[1]{0}', space=sflag, size = 0x4, scoped, tag = 'scoped memory for tpu_custom_call.1']
    #allocation5 [shape = 'u8[8192]{0}', space=vmem, size = 0x2000, scoped, tag = 'input window, operand 1, single buffered']
    #allocation6 [shape = 's32[1]{0}', space=sflag, size = 0x4, scoped, tag = 'scoped memory for tpu_custom_call.1']
    #allocation7 [shape = 'u8[8192]{0}', space=vmem, size = 0x2000, scoped, tag = 'output window, operand 0, single buffered']
    #allocation8 [shape = 'u8[1024]{0}', space=vmem, size = 0x400, scoped, tag = 'output window, operand 1, single buffered']
    #allocation9 [shape = 's32[1]{0}', space=sflag, size = 0x4, scoped, tag = 'scoped memory for tpu_custom_call.1']
    %9 = vsyncpa [#allocation3], 0
    %10 = vsyncpa [#allocation6], 0
    %11 = vsyncpa [#allocation4], 0
    %12 = vsyncpa [#allocation9], 0
    // Predicated region
    $region2: #{tpu_custom_call.1} parent=1 // pred_check
      _
    $region3: #{tpu_custom_call.1} parent=1 // pred_check_branch
      %14 = sbr.rel (0) target = $region5
    $region4: #{tpu_custom_call.1} parent=1 // pred_region
      %s15 = sadd.s32 0, 0
      %s17 = ssub.s32 256, 256
      %18 = vsyncadd [#allocation3], %s17
      %s19 = smul.addr %s15, 2
      %s20 = smul.addr %s19, 128
      %s21 = scalar_lea.hbm %s0, %s20
      %s23 = sshll.u32 [#allocation2], 4
      %s24 = int_to_ptr.vmem [resolvable:$true] %s23
      %26 = dma.hbm_to_vmem [thread:$0]  %s21, 256, %s24, [#allocation3]
    $region5: #{tpu_custom_call.1} parent=1 // pred_fallthru
      _
    // Predicated region
    $region6: #{tpu_custom_call.1} parent=1 // pred_check
      _
    $region7: #{tpu_custom_call.1} parent=1 // pred_check_branch
      %28 = sbr.rel (0) target = $region9
    $region8: #{tpu_custom_call.1} parent=1 // pred_region
      %s29 = sadd.s32 0, 0
      %s31 = ssub.s32 256, 256
      %32 = vsyncadd [#allocation6], %s31
      %s33 = smul.addr %s29, 2
      %s34 = smul.addr %s33, 128
      %s35 = scalar_lea.hbm %s1, %s34
      %s37 = sshll.u32 [#allocation5], 4
      %s38 = int_to_ptr.vmem [resolvable:$true] %s37
      %40 = dma.hbm_to_vmem [thread:$0]  %s35, 256, %s38, [#allocation6]
    $region9: #{tpu_custom_call.1} parent=1 // pred_fallthru
      _
    // Predicated region
    $region10: #{tpu_custom_call.1} parent=1 // pred_check
      _
    $region11: #{tpu_custom_call.1} parent=1 // pred_check_branch
      %42 = sbr.rel (0) target = $region13
    $region12: #{tpu_custom_call.1} parent=1 // pred_region
      %43 = dma.done [#allocation3], 256
    $region13: #{tpu_custom_call.1} parent=1 // pred_fallthru
      _
    // Predicated region
    $region14: #{tpu_custom_call.1} parent=1 // pred_check
      _
    $region15: #{tpu_custom_call.1} parent=1 // pred_check_branch
      %45 = sbr.rel (0) target = $region17
    $region16: #{tpu_custom_call.1} parent=1 // pred_region
      %46 = dma.done [#allocation6], 256
    $region17: #{tpu_custom_call.1} parent=1 // pred_fallthru
      _
    %s47 = sadd.s32 0, 0
    %s48 = sadd.s32 0, 0
    %s49 = sadd.s32 0, 0
    %v50 = vld [vmem:[#allocation2] sm:$0xff]
    %v51 = vld [vmem:[#allocation2 + $0x8] sm:$0xff]
    %v52 = vmul.f32 %v50, 0.5
    %v53 = vmul.f32 %v51, 0.5
    %v54 = vadd.f32 %v52, 0.5
    %v55 = vadd.f32 %v53, 0.5
    %v56 = vld [vmem:[#allocation5] sm:$0xff]
    %v57 = vld [vmem:[#allocation5 + $0x8] sm:$0xff]
    %v58 = vmul.f32 %v56, 0.5
    %v59 = vmul.f32 %v57, 0.5
    %v60 = vadd.f32 %v58, 0.5
    %v61 = vadd.f32 %v59, 0.5
    %v62 = vsub.f32 0.3, %v54
    %v63 = vsub.f32 0.3, %v55
    %v64 = vadd.f32 %v62, %v60
    %v65 = vadd.f32 %v63, %v61
    %v66 = vmax.f32 %v64, 0.0
    %v67 = vmax.f32 %v65, 0.0
    %68 = vst [vmem:[#allocation7] sm:$0xff] %v54
    %69 = vst [vmem:[#allocation7 + $0x8] sm:$0xff] %v55
    %p70 = scmp.eq.s32.totalorder 0, 0
    // Predicated region
    $region18: #{tpu_custom_call.1} parent=1 // pred_check
      %p71 = pneg %p70
    $region19: #{tpu_custom_call.1} parent=1 // pred_check_branch
      %73 = sbr.rel (%p71) target = $region21
    $region20: #{tpu_custom_call.1} parent=1 // pred_region
      %v74 = vlaneseq
      %vm75 = vcmp.ge.s32.totalorder %v74, 0
      %vm76 = vcmp.lt.s32.totalorder %v74, 256
      %vm77 = vmand %vm75, %vm76
      %78 = vst.msk [vmem:[#allocation8] sm:$0x3] %vm77, 0.0
    $region21: #{tpu_custom_call.1} parent=1 // pred_fallthru
      _
    %v79 = vld [vmem:[#allocation8] sm:$0x3]
    %v80 = vrot.slane %v66, 4
    %v81 = vadd.f32 %v66, %v80
    %v82 = vrot.slane %v81, 2
    %v83 = vadd.f32 %v81, %v82
    %v84 = vrot.slane %v83, 1
    %v85 = vadd.f32 %v83, %v84
    %v86 = vrot.slane %v67, 4
    %v87 = vadd.f32 %v67, %v86
    %v88 = vrot.slane %v87, 2
    %v89 = vadd.f32 %v87, %v88
    %v90 = vrot.slane %v89, 1
    %v91 = vadd.f32 %v89, %v90
    %v94 = vcombine.low %v85, %v91
    %v96 = vunpack.c.l.s4 1966171168
    %v97 = vunpack.c.0.s8 %v96
    %v98 = vlaneseq
    %v99 = vshrl.u32 %v98, 7
    %v100 = vsub.s32 %v97, %v99
    %v101 = vrot.slane %v94, %v100
    %v103 = vunpack.c.l.s4 1966171168
    %v104 = vunpack.c.0.s8 %v103
    %v105 = vlaneseq
    %v106 = vshrl.u32 %v105, 7
    %v107 = vsub.s32 %v104, %v106
    %v108 = vrot.slane %v101, %v107
    %v110 = vadd.f32 %v79, %v108
    %v111 = vlaneseq
    %vm112 = vcmp.ge.s32.totalorder %v111, 0
    %vm113 = vcmp.lt.s32.totalorder %v111, 256
    %vm114 = vmand %vm112, %vm113
    %115 = vst.msk [vmem:[#allocation8] sm:$0x3] %vm114, %v110
    // Predicated region
    $region22: #{tpu_custom_call.1} parent=1 // pred_check
      _
    $region23: #{tpu_custom_call.1} parent=1 // pred_check_branch
      %117 = sbr.rel (0) target = $region25
    $region24: #{tpu_custom_call.1} parent=1 // pred_region
      %s118 = sadd.s32 0, 0
      %s120 = ssub.s32 256, 256
      %121 = vsyncadd [#allocation4], %s120
      %s122 = smul.addr %s118, 2
      %s123 = smul.addr %s122, 128
      %s124 = scalar_lea.hbm %s2, %s123
      %s126 = sshll.u32 [#allocation7], 4
      %s127 = int_to_ptr.vmem [resolvable:$true] %s126
      %129 = dma.vmem_to_hbm [thread:$0]  %s127, 256, %s124, [#allocation4]
    $region25: #{tpu_custom_call.1} parent=1 // pred_fallthru
      _
    // Predicated region
    $region26: #{tpu_custom_call.1} parent=1 // pred_check
      _
    $region27: #{tpu_custom_call.1} parent=1 // pred_check_branch
      %131 = sbr.rel (0) target = $region29
    $region28: #{tpu_custom_call.1} parent=1 // pred_region
      %s133 = ssub.s32 32, 32
      %134 = vsyncadd [#allocation9], %s133
      %s136 = sshll.u32 [#allocation8], 4
      %s137 = int_to_ptr.vmem [resolvable:$true] %s136
      %139 = dma.vmem_to_hbm [thread:$0]  %s137, 32, %s3, [#allocation9]
    $region29: #{tpu_custom_call.1} parent=1 // pred_fallthru
      _
    // Predicated region
    $region30: #{tpu_custom_call.1} parent=1 // pred_check
      _
    $region31: #{tpu_custom_call.1} parent=1 // pred_check_branch
      %141 = sbr.rel (0) target = $region33
    $region32: #{tpu_custom_call.1} parent=1 // pred_region
      %142 = dma.done [#allocation4], 256
    $region33: #{tpu_custom_call.1} parent=1 // pred_fallthru
      _
    // Predicated region
    $region34: #{tpu_custom_call.1} parent=1 // pred_check
      _
    $region35: #{tpu_custom_call.1} parent=1 // pred_check_branch
      %144 = sbr.rel (0) target = $region37
    $region36: #{tpu_custom_call.1} parent=1 // pred_region
      %145 = dma.done [#allocation9], 32
    $region37: #{tpu_custom_call.1} parent=1 // pred_fallthru
      _
    %146 = vsyncpa [#allocation3], 1
    %147 = vsyncpa [#allocation6], 1
    %148 = vsyncpa [#allocation4], 1
    %149 = vsyncpa [#allocation9], 1

</llo_original>
